<compile_context>
chip_gen: v5e
topology: v5e:2x2
jax: 0.10.0
libtpu: 0.0.40
codegen_flags: <defaults>
</compile_context>

<pallas_src>
import jax
import jax.numpy as jnp
from jax import lax
from jax.experimental import pallas as pl
from jax.experimental.pallas import tpu as pltpu


def _make_mlp_cell_kernel(num_layers: int, steps_per_block: int):
    """Kernel for a fixed (static) number of layers (num_layers >= 2)."""
    n_params = 3 + 2 * (num_layers - 1)  # W0_hid, W0_x, b0, then (Wi, bi)*
    unroll = steps_per_block <= 16

    def kernel(*refs):
        # refs = (x_chunk, h0, W0_hid, W0_x, b0, W1, b1, ..., out_chunk, h_sc)
        x_ref, h0_ref = refs[0], refs[1]
        param_refs = refs[2:2 + n_params]
        out_ref = refs[2 + n_params]
        h_sc = refs[3 + n_params]

        B = h0_ref.shape[0]

        # Seed the resident hidden state once (first chunk only).
        @pl.when(pl.program_id(0) == 0)
        def _():
            h_sc[...] = h0_ref[...]

        # Weights loaded once per chunk; they are VMEM-resident across the
        # whole grid (constant-block index maps).
        w0h = param_refs[0][...]                       # (L, H)  bf16
        w0x = param_refs[1][...]                       # (I, H)  bf16
        ws = [param_refs[3 + 2 * (i - 1)][...] for i in range(1, num_layers)]

        # Hoisted bias broadcasts (computed once per chunk, reused per step).
        b0 = jnp.broadcast_to(param_refs[2][...],
                              (B, param_refs[2].shape[-1]))
        bs = [jnp.broadcast_to(param_refs[4 + 2 * (i - 1)][...],
                               (B, param_refs[4 + 2 * (i - 1)].shape[-1]))
              for i in range(1, num_layers)]

        def step(tt, h):
            x_t = x_ref[tt]                            # (B, I) f32
            # Layer 0: split-weight form of Linear(concat([h, x])) -- no
            # concat. bf16 dot operands, f32 accumulate, f32 elementwise.
            act = (jnp.dot(h.astype(w0h.dtype), w0h,
                           preferred_element_type=jnp.float32)
                   + jnp.dot(x_t.astype(w0x.dtype), w0x,
                             preferred_element_type=jnp.float32)
                   + b0)
            act = jnp.maximum(act, 0.0)                # ReLU (num_layers >= 2)
            for i in range(1, num_layers):
                act = jnp.dot(act.astype(ws[i - 1].dtype), ws[i - 1],
                              preferred_element_type=jnp.float32) + bs[i - 1]
                if i != num_layers - 1:
                    act = jnp.maximum(act, 0.0)
            # 0.1 residual scale is pre-folded into the last layer.
            h_new = h + act
            out_ref[tt] = h_new
            return h_new

        h_final = lax.fori_loop(0, steps_per_block, step, h_sc[...],
                                unroll=unroll)
        h_sc[...] = h_final

    return kernel


def prepare_mlp_cell_params(weights, biases, latent_size,
                            weight_dtype=jnp.bfloat16):
    """One-time parameter prep (NOT per forward call).

    weights : list of (out_features, in_features)  -- PyTorch convention
    biases  : list of (out_features,)

    Returns a flat tuple:
      (W0_hid (L,H), W0_x (I,H), b0 (1,H), W1 (H,H), b1 (1,H), ...,
       Wlast*0.1 (H,L), blast*0.1 (1,L))
    Weight matrices stored in `weight_dtype` (bf16 MXU operands), biases f32.
    """
    num_layers = len(weights)
    assert num_layers >= 2, "MLPCell residual requires num_layers >= 2"

    w0 = jnp.asarray(weights[0], jnp.float32)           # (H, L+I)
    b0 = jnp.asarray(biases[0], jnp.float32)
    params = [
        w0[:, :latent_size].T.astype(weight_dtype),      # (L, H)  hidden part
        w0[:, latent_size:].T.astype(weight_dtype),      # (I, H)  input part
        b0[None, :],                                     # (1, H)  f32
    ]
    for i in range(1, num_layers):
        w = jnp.asarray(weights[i], jnp.float32).T       # (in, out)
        b = jnp.asarray(biases[i], jnp.float32)[None, :]
        if i == num_layers - 1:
            w = w * 0.1                                  # fold residual scale
            b = b * 0.1
        params.append(w.astype(weight_dtype))
        params.append(b)                                 # f32
    return tuple(params)


def mlp_cell_scan(x_seq, hidden0, params, *, steps_per_block=8):
    """Run the MLPCell recurrence for all timesteps in ONE pallas_call.

    x_seq   : (T, B, input_size)
    hidden0 : (B, latent_size)
    params  : output of prepare_mlp_cell_params
    returns : (T, B, latent_size) -- hidden after each step
    """
    T, B, I = x_seq.shape
    L = hidden0.shape[-1]
    num_layers = (len(params) - 3) // 2 + 1

    # Chunk the time axis: TB timesteps per grid step. Pad T up to a multiple
    # of TB (padded steps run on zero inputs; their outputs are sliced off
    # and nothing downstream consumes the extra hidden updates).
    TB = min(int(steps_per_block), T)
    num_chunks = pl.cdiv(T, TB)
    T_pad = num_chunks * TB
    x_f32 = x_seq.astype(jnp.float32)
    if T_pad != T:
        x_f32 = jnp.pad(x_f32, ((0, T_pad - T), (0, 0), (0, 0)))

    kernel = _make_mlp_cell_kernel(num_layers, TB)

    in_specs = [
        # Per-chunk input slab (TB timesteps at once).
        pl.BlockSpec((TB, B, I), lambda c: (c, 0, 0)),
        # Initial hidden: same block every chunk -> DMA'd once.
        pl.BlockSpec((B, L), lambda c: (0, 0)),
    ]
    # Weights/biases: same block every chunk -> VMEM-resident for the loop.
    in_specs += [pl.BlockSpec(p.shape, lambda c: (0, 0)) for p in params]

    out_specs = pl.BlockSpec((TB, B, L), lambda c: (c, 0, 0))

    # Advisory cost hint (tiny kernel; keeps XLA from over-serializing).
    weight_mats = [params[0], params[1]] + [params[3 + 2 * i]
                                            for i in range(num_layers - 1)]
    flops = int(2 * B * sum(int(w.shape[0]) * int(w.shape[1])
                            for w in weight_mats)) * int(T_pad)
    bytes_accessed = int(4 * (x_f32.size + hidden0.size + T_pad * B * L)
                         + sum(int(p.size) * p.dtype.itemsize for p in params))
    cost = pl.CostEstimate(flops=flops, transcendentals=0,
                           bytes_accessed=bytes_accessed)

    out = pl.pallas_call(
        kernel,
        out_shape=jax.ShapeDtypeStruct((T_pad, B, L), jnp.float32),
        grid_spec=pltpu.PrefetchScalarGridSpec(
            num_scalar_prefetch=0,
            grid=(num_chunks,),
            in_specs=in_specs,
            out_specs=out_specs,
            scratch_shapes=[pltpu.VMEM((B, L), jnp.float32)],
        ),
        compiler_params=pltpu.CompilerParams(
            # Sequential recurrence -> "arbitrary" (cannot shard timesteps).
            dimension_semantics=("arbitrary",),
        ),
        cost_estimate=cost,
    )(x_f32, hidden0.astype(jnp.float32), *params)

    return out[:T]


def mlp_cell_forward(x, hidden, params):
    """Single-step forward with the original module's semantics."""
    return mlp_cell_scan(x[None], hidden, params)[0]


# ----------------------------- references ---------------------------------

def _reference_forward(x, hidden, weights, biases):
    act = jnp.concatenate([hidden, x], axis=1)
    n = len(weights)
    for i, (w, b) in enumerate(zip(weights, biases)):
        act = act @ w.T + b
        if i != n - 1:
            act = jnp.maximum(act, 0.0)
    return hidden + 0.1 * act


def _reference_scan(x_seq, hidden0, weights, biases):
    h = hidden0
    outs = []
    for t in range(x_seq.shape[0]):
        h = _reference_forward(x_seq[t], h, weights, biases)
        outs.append(h)
    return jnp.stack(outs)


if __name__ == "__main__":
    batch = 8
    input_size = 16
    latent_size = 32
    layer_hidden_size = 64
    num_layers = 3
    seq_len = 6

    key = jax.random.PRNGKey(0)
    keys = jax.random.split(key, 2 + num_layers)

    x_seq = jax.random.normal(keys[0], (seq_len, batch, input_size),
                              dtype=jnp.float32)
    hidden = jax.random.normal(keys[1], (batch, latent_size),
                               dtype=jnp.float32)

    # nn.Linear-shaped parameters (PyTorch (out, in) convention).
    in_dims = [input_size + latent_size] + [layer_hidden_size] * (num_layers - 1)
    out_dims = [layer_hidden_size] * (num_layers - 1) + [latent_size]

    weights, biases = [], []
    for i, (din, dout) in enumerate(zip(in_dims, out_dims)):
        wk, bk = jax.random.split(keys[2 + i])
        scale = 1.0 / jnp.sqrt(jnp.float32(din))
        weights.append(jax.random.uniform(wk, (dout, din), jnp.float32,
                                          -scale, scale))
        biases.append(jax.random.uniform(bk, (dout,), jnp.float32,
                                         -scale, scale))

    # One-time param prep (transpose, split W0, fold 0.1, bf16 weights).
    params = prepare_mlp_cell_params(weights, biases, latent_size)

    # bf16 MXU operands with f32 accumulate -> relaxed tolerance (damped by
    # the 0.1 residual scale).
    ATOL = RTOL = 2e-2

    # Single-step forward (module semantics).
    out1 = mlp_cell_forward(x_seq[0], hidden, params)
    out1 = jax.block_until_ready(out1)
    ref1 = _reference_forward(x_seq[0], hidden, weights, biases)
    assert out1.shape == (batch, latent_size)
    assert jnp.allclose(out1, ref1, atol=ATOL, rtol=RTOL)

    # Fused multi-step recurrence in a single gridded pallas_call
    # (single chunk: TB == seq_len).
    out_seq = mlp_cell_scan(x_seq, hidden, params)
    out_seq = jax.block_until_ready(out_seq)
    ref_seq = _reference_scan(x_seq, hidden, weights, biases)
    assert out_seq.shape == (seq_len, batch, latent_size)
    assert jnp.allclose(out_seq, ref_seq, atol=ATOL, rtol=RTOL)

    # Multi-chunk path: exercises time-axis padding and hidden-state
    # persistence across grid steps.
    out_seq2 = mlp_cell_scan(x_seq, hidden, params, steps_per_block=4)
    out_seq2 = jax.block_until_ready(out_seq2)
    assert out_seq2.shape == (seq_len, batch, latent_size)
    assert jnp.allclose(out_seq2, ref_seq, atol=ATOL, rtol=RTOL)

    print("KERNEL_OK")
</pallas_src>

<mosaic_0001>
module attributes {stable_mosaic.version = 11 : i64} {
  func.func @kernel(%arg0: i32, %arg1: memref<1x8x16xf32, #tpu.memory_space<vmem>>, %arg2: memref<8x32xf32, #tpu.memory_space<vmem>>, %arg3: memref<32x64xbf16, #tpu.memory_space<vmem>>, %arg4: memref<16x64xbf16, #tpu.memory_space<vmem>>, %arg5: memref<1x64xf32, #tpu.memory_space<vmem>>, %arg6: memref<64x64xbf16, #tpu.memory_space<vmem>>, %arg7: memref<1x64xf32, #tpu.memory_space<vmem>>, %arg8: memref<64x32xbf16, #tpu.memory_space<vmem>>, %arg9: memref<1x32xf32, #tpu.memory_space<vmem>>, %arg10: memref<1x8x32xf32, #tpu.memory_space<vmem>>, %arg11: memref<8x32xf32, #tpu.memory_space<vmem>>) attributes {dimension_semantics = [#tpu.dimension_semantics<arbitrary>], iteration_bounds = array<i64: 1>, scalar_prefetch = 0 : i64, scratch_operands = 1 : i64, tpu.core_type = #tpu.core_type<tc>, window_params = [{transform_indices = @transform_0, window_bounds = array<i64: 1, 8, 16>}, {pipeline_mode = #tpu.pipeline_mode<synchronous>, transform_indices = @transform_1, window_bounds = array<i64: 8, 32>}, {pipeline_mode = #tpu.pipeline_mode<synchronous>, transform_indices = @transform_2, window_bounds = array<i64: 32, 64>}, {pipeline_mode = #tpu.pipeline_mode<synchronous>, transform_indices = @transform_3, window_bounds = array<i64: 16, 64>}, {pipeline_mode = #tpu.pipeline_mode<synchronous>, transform_indices = @transform_4, window_bounds = array<i64: 1, 64>}, {pipeline_mode = #tpu.pipeline_mode<synchronous>, transform_indices = @transform_5, window_bounds = array<i64: 64, 64>}, {pipeline_mode = #tpu.pipeline_mode<synchronous>, transform_indices = @transform_6, window_bounds = array<i64: 1, 64>}, {pipeline_mode = #tpu.pipeline_mode<synchronous>, transform_indices = @transform_7, window_bounds = array<i64: 64, 32>}, {pipeline_mode = #tpu.pipeline_mode<synchronous>, transform_indices = @transform_8, window_bounds = array<i64: 1, 32>}, {transform_indices = @transform_9, window_bounds = array<i64: 1, 8, 32>}]} {
    %c0_i32 = arith.constant 0 : i32
    %0 = arith.cmpi eq, %arg0, %c0_i32 : i32
    %1 = arith.extui %0 : i1 to i32
    %c0_i32_0 = arith.constant 0 : i32
    %2 = arith.cmpi ne, %1, %c0_i32_0 : i32
    scf.if %2 {
      %c0_28 = arith.constant 0 : index
      %c0_29 = arith.constant 0 : index
      %42 = vector.load %arg2[%c0_28, %c0_29] : memref<8x32xf32, #tpu.memory_space<vmem>>, vector<8x32xf32>
      %c0_30 = arith.constant 0 : index
      %c0_31 = arith.constant 0 : index
      %43 = vector.load %arg11[%c0_30, %c0_31] : memref<8x32xf32, #tpu.memory_space<vmem>>, vector<8x32xf32>
      tpu.vector_store %arg11[%c0_30, %c0_31], %42 {strides = array<i32>} : memref<8x32xf32, #tpu.memory_space<vmem>>, vector<8x32xf32>,
    } else {
    }
    %c0 = arith.constant 0 : index
    %c0_1 = arith.constant 0 : index
    %3 = vector.load %arg3[%c0, %c0_1] : memref<32x64xbf16, #tpu.memory_space<vmem>>, vector<32x64xbf16>
    %c0_2 = arith.constant 0 : index
    %c0_3 = arith.constant 0 : index
    %4 = vector.load %arg4[%c0_2, %c0_3] : memref<16x64xbf16, #tpu.memory_space<vmem>>, vector<16x64xbf16>
    %c0_4 = arith.constant 0 : index
    %c0_5 = arith.constant 0 : index
    %5 = vector.load %arg6[%c0_4, %c0_5] : memref<64x64xbf16, #tpu.memory_space<vmem>>, vector<64x64xbf16>
    %c0_6 = arith.constant 0 : index
    %c0_7 = arith.constant 0 : index
    %6 = vector.load %arg8[%c0_6, %c0_7] : memref<64x32xbf16, #tpu.memory_space<vmem>>, vector<64x32xbf16>
    %c0_8 = arith.constant 0 : index
    %c0_9 = arith.constant 0 : index
    %7 = vector.load %arg5[%c0_8, %c0_9] : memref<1x64xf32, #tpu.memory_space<vmem>>, vector<1x64xf32>
    %8 = vector.shape_cast %7 : vector<1x64xf32> to vector<1x64xf32>
    %9 = vector.broadcast %8 : vector<1x64xf32> to vector<8x64xf32>
    %c0_10 = arith.constant 0 : index
    %c0_11 = arith.constant 0 : index
    %10 = vector.load %arg7[%c0_10, %c0_11] : memref<1x64xf32, #tpu.memory_space<vmem>>, vector<1x64xf32>
    %11 = vector.shape_cast %10 : vector<1x64xf32> to vector<1x64xf32>
    %12 = vector.broadcast %11 : vector<1x64xf32> to vector<8x64xf32>
    %c0_12 = arith.constant 0 : index
    %c0_13 = arith.constant 0 : index
    %13 = vector.load %arg9[%c0_12, %c0_13] : memref<1x32xf32, #tpu.memory_space<vmem>>, vector<1x32xf32>
    %14 = vector.shape_cast %13 : vector<1x32xf32> to vector<1x32xf32>
    %15 = vector.broadcast %14 : vector<1x32xf32> to vector<8x32xf32>
    %c0_14 = arith.constant 0 : index
    %c0_15 = arith.constant 0 : index
    %16 = vector.load %arg11[%c0_14, %c0_15] : memref<8x32xf32, #tpu.memory_space<vmem>>, vector<8x32xf32>
    %c0_i32_16 = arith.constant 0 : i32
    %17 = arith.index_cast %c0_i32_16 : i32 to index
    %c0_17 = arith.constant 0 : index
    %c0_18 = arith.constant 0 : index
    %18 = vector.load %arg1[%17, %c0_17, %c0_18] : memref<1x8x16xf32, #tpu.memory_space<vmem>>, vector<1x8x16xf32>
    %19 = vector.shape_cast %18 : vector<1x8x16xf32> to vector<8x16xf32>
    %20 = arith.truncf %16 : vector<8x32xf32> to vector<8x32xbf16>
    %cst = arith.constant dense<0.000000e+00> : vector<8x64xf32>
    %21 = tpu.matmul %20, %3, %cst {dimension_numbers = #tpu.dot_dimension_numbers<[1], [0], [0], [1], [0, 0, 1, 1], [], []>} : vector<8x32xbf16>, vector<32x64xbf16>, vector<8x64xf32> -> vector<8x64xf32>
    %22 = arith.truncf %19 : vector<8x16xf32> to vector<8x16xbf16>
    %cst_19 = arith.constant dense<0.000000e+00> : vector<8x64xf32>
    %23 = tpu.matmul %22, %4, %cst_19 {dimension_numbers = #tpu.dot_dimension_numbers<[1], [0], [0], [1], [0, 0, 1, 1], [], []>} : vector<8x16xbf16>, vector<16x64xbf16>, vector<8x64xf32> -> vector<8x64xf32>
    %24 = arith.addf %21, %23 : vector<8x64xf32>
    %25 = arith.addf %24, %9 : vector<8x64xf32>
    %cst_20 = arith.constant 0.000000e+00 : f32
    %26 = vector.broadcast %cst_20 : f32 to vector<8x64xf32>
    %27 = arith.maximumf %25, %26 : vector<8x64xf32>
    %28 = arith.truncf %27 : vector<8x64xf32> to vector<8x64xbf16>
    %cst_21 = arith.constant dense<0.000000e+00> : vector<8x64xf32>
    %29 = tpu.matmul %28, %5, %cst_21 {dimension_numbers = #tpu.dot_dimension_numbers<[1], [0], [0], [1], [0, 0, 1, 1], [], []>} : vector<8x64xbf16>, vector<64x64xbf16>, vector<8x64xf32> -> vector<8x64xf32>
    %30 = arith.addf %29, %12 : vector<8x64xf32>
    %cst_22 = arith.constant 0.000000e+00 : f32
    %31 = vector.broadcast %cst_22 : f32 to vector<8x64xf32>
    %32 = arith.maximumf %30, %31 : vector<8x64xf32>
    %33 = arith.truncf %32 : vector<8x64xf32> to vector<8x64xbf16>
    %cst_23 = arith.constant dense<0.000000e+00> : vector<8x32xf32>
    %34 = tpu.matmul %33, %6, %cst_23 {dimension_numbers = #tpu.dot_dimension_numbers<[1], [0], [0], [1], [0, 0, 1, 1], [], []>} : vector<8x64xbf16>, vector<64x32xbf16>, vector<8x32xf32> -> vector<8x32xf32>
    %35 = arith.addf %34, %15 : vector<8x32xf32>
    %36 = arith.addf %16, %35 : vector<8x32xf32>
    %37 = arith.index_cast %c0_i32_16 : i32 to index
    %c0_24 = arith.constant 0 : index
    %c0_25 = arith.constant 0 : index
    %38 = vector.load %arg10[%37, %c0_24, %c0_25] : memref<1x8x32xf32, #tpu.memory_space<vmem>>, vector<1x8x32xf32>
    %39 = vector.shape_cast %38 : vector<1x8x32xf32> to vector<8x32xf32>
    %40 = vector.shape_cast %36 : vector<8x32xf32> to vector<1x8x32xf32>
    tpu.vector_store %arg10[%37, %c0_24, %c0_25], %40 {strides = array<i32>} : memref<1x8x32xf32, #tpu.memory_space<vmem>>, vector<1x8x32xf32>,
    %c1_i32 = arith.constant 1 : i32
    %c0_26 = arith.constant 0 : index
    %c0_27 = arith.constant 0 : index
    %41 = vector.load %arg11[%c0_26, %c0_27] : memref<8x32xf32, #tpu.memory_space<vmem>>, vector<8x32xf32>
    tpu.vector_store %arg11[%c0_26, %c0_27], %36 {strides = array<i32>} : memref<8x32xf32, #tpu.memory_space<vmem>>, vector<8x32xf32>,
    return
  }
  func.func @transform_0(%arg0: i32) -> (i32, i32, i32) {
    %c0_i32 = arith.constant 0 : i32
    %c0_i32_0 = arith.constant 0 : i32
    %c0_i32_1 = arith.constant 0 : i32
    return %arg0, %c0_i32, %c0_i32_0 : i32, i32, i32
  }
  func.func @transform_1(%arg0: i32) -> (i32, i32) {
    %c0_i32 = arith.constant 0 : i32
    %c0_i32_0 = arith.constant 0 : i32
    %c0_i32_1 = arith.constant 0 : i32
    return %c0_i32, %c0_i32_0 : i32, i32
  }
  func.func @transform_2(%arg0: i32) -> (i32, i32) {
    %c0_i32 = arith.constant 0 : i32
    %c0_i32_0 = arith.constant 0 : i32
    %c0_i32_1 = arith.constant 0 : i32
    return %c0_i32, %c0_i32_0 : i32, i32
  }
  func.func @transform_3(%arg0: i32) -> (i32, i32) {
    %c0_i32 = arith.constant 0 : i32
    %c0_i32_0 = arith.constant 0 : i32
    %c0_i32_1 = arith.constant 0 : i32
    return %c0_i32, %c0_i32_0 : i32, i32
  }
  func.func @transform_4(%arg0: i32) -> (i32, i32) {
    %c0_i32 = arith.constant 0 : i32
    %c0_i32_0 = arith.constant 0 : i32
    %c0_i32_1 = arith.constant 0 : i32
    return %c0_i32, %c0_i32_0 : i32, i32
  }
  func.func @transform_5(%arg0: i32) -> (i32, i32) {
    %c0_i32 = arith.constant 0 : i32
    %c0_i32_0 = arith.constant 0 : i32
    %c0_i32_1 = arith.constant 0 : i32
    return %c0_i32, %c0_i32_0 : i32, i32
  }
  func.func @transform_6(%arg0: i32) -> (i32, i32) {
    %c0_i32 = arith.constant 0 : i32
    %c0_i32_0 = arith.constant 0 : i32
    %c0_i32_1 = arith.constant 0 : i32
    return %c0_i32, %c0_i32_0 : i32, i32
  }
  func.func @transform_7(%arg0: i32) -> (i32, i32) {
    %c0_i32 = arith.constant 0 : i32
    %c0_i32_0 = arith.constant 0 : i32
    %c0_i32_1 = arith.constant 0 : i32
    return %c0_i32, %c0_i32_0 : i32, i32
  }
  func.func @transform_8(%arg0: i32) -> (i32, i32) {
    %c0_i32 = arith.constant 0 : i32
    %c0_i32_0 = arith.constant 0 : i32
    %c0_i32_1 = arith.constant 0 : i32
    return %c0_i32, %c0_i32_0 : i32, i32
  }
  func.func @transform_9(%arg0: i32) -> (i32, i32, i32) {
    %c0_i32 = arith.constant 0 : i32
    %c0_i32_0 = arith.constant 0 : i32
    %c0_i32_1 = arith.constant 0 : i32
    return %arg0, %c0_i32, %c0_i32_0 : i32, i32, i32
  }
}

</mosaic_0001>

<llo_original>
// kernel: tpu_custom_call.1
$region0: #{tpu_custom_call.1}
  #allocation0 [shape = 'u32[]', space=smem, size = 0x4, offset = 0x4, fixed_abs, tag = 'smem constant byte address 0x4 - core index']
  #allocation1 [shape = 'u32[72,128]{1,0:T(1,128)}', space=vmem, size = 0x9000, scoped, tag = 'internal scratch']
  #allocation2 [shape = 'f32[8,32]{1,0:T(8,128)}', space=vmem, size = 0x1000, scoped, tag = 'scratch operand']
  %s0 = inlined_call_operand.hbm [shape: f32[1,8,16], index: 0, kind: input, shape index: {}]
  %s1 = inlined_call_operand.hbm [shape: f32[8,32], index: 1, kind: input, shape index: {}]
  %s2 = inlined_call_operand.vmem [shape: bf16[32,64], index: 2, kind: input, shape index: {}]
  %s3 = inlined_call_operand.hbm [shape: bf16[16,64], index: 3, kind: input, shape index: {}]
  %s4 = inlined_call_operand.vmem [shape: f32[1,64], index: 4, kind: input, shape index: {}]
  %s5 = inlined_call_operand.vmem [shape: bf16[64,64], index: 5, kind: input, shape index: {}]
  %s6 = inlined_call_operand.vmem [shape: f32[1,64], index: 6, kind: input, shape index: {}]
  %s7 = inlined_call_operand.vmem [shape: bf16[64,32], index: 7, kind: input, shape index: {}]
  %s8 = inlined_call_operand.vmem [shape: f32[1,32], index: 8, kind: input, shape index: {}]
  %s9 = inlined_call_operand.hbm [shape: f32[1,8,32], index: 9, kind: output, shape index: {}]
  %s10 = sld [smem:[#allocation0]]
  $region62: #{tpu_custom_call.1} parent=0
    _
  %s12 = ssub.s32 1, %s10
  %s13 = scalar_select 0, %s12, %s10
  $region1: #{tpu_custom_call.1} parent=0
    #allocation3 [shape = 'u8[4096]{0}', space=vmem, size = 0x1000, scoped, tag = 'input window, operand 0, single buffered']
    #allocation4 [shape = 's32[1]{0}', space=sflag, size = 0x4, scoped, tag = 'scoped memory for tpu_custom_call.1']
    #allocation5 [shape = 's32[1]{0}', space=sflag, size = 0x4, scoped, tag = 'scoped memory for tpu_custom_call.1']
    #allocation6 [shape = 'u8[4096]{0}', space=vmem, size = 0x1000, scoped, tag = 'input window, operand 1, single buffered']
    #allocation7 [shape = 's32[1]{0}', space=sflag, size = 0x4, scoped, tag = 'scoped memory for tpu_custom_call.1']
    #allocation8 [shape = 'u8[4096]{0}', space=vmem, size = 0x1000, scoped, tag = 'input window, operand 3, single buffered']
    #allocation9 [shape = 'u8[4096]{0}', space=vmem, size = 0x1000, scoped, tag = 'output window, operand 0, single buffered']
    %14 = vsyncpa [#allocation4], 0
    %15 = vsyncpa [#allocation7], 0
    %16 = vsyncpa [#allocation5], 0
    // Predicated region
    $region2: #{tpu_custom_call.1} parent=1 // pred_check
      _
    $region3: #{tpu_custom_call.1} parent=1 // pred_check_branch
      %18 = sbr.rel (0) target = $region5
    $region4: #{tpu_custom_call.1} parent=1 // pred_region
      %20 = vsyncadd [#allocation4], 0
      %s22 = sshll.u32 %s0, 4
      %s23 = int_to_ptr.hbm [resolvable:$true] %s22
      %s24 = sshll.u32 [#allocation3], 4
      %s25 = int_to_ptr.vmem [resolvable:$true] %s24
      %27 = dma.hbm_to_vmem [thread:$0]  %s23, 128, %s25, [#allocation4]
    $region5: #{tpu_custom_call.1} parent=1 // pred_fallthru
      _
    // Predicated region
    $region6: #{tpu_custom_call.1} parent=1 // pred_check
      _
    $region7: #{tpu_custom_call.1} parent=1 // pred_check_branch
      %29 = sbr.rel (0) target = $region9
    $region8: #{tpu_custom_call.1} parent=1 // pred_region
      %31 = vsyncadd [#allocation7], 0
      %s33 = sshll.u32 %s1, 4
      %s34 = int_to_ptr.hbm [resolvable:$true] %s33
      %s35 = sshll.u32 [#allocation6], 4
      %s36 = int_to_ptr.vmem [resolvable:$true] %s35
      %38 = dma.hbm_to_vmem [thread:$0]  %s34, 128, %s36, [#allocation7]
    $region9: #{tpu_custom_call.1} parent=1 // pred_fallthru
      _
    // Predicated region
    $region10: #{tpu_custom_call.1} parent=1 // pred_check
      _
    $region11: #{tpu_custom_call.1} parent=1 // pred_check_branch
      %40 = sbr.rel (0) target = $region13
    $region12: #{tpu_custom_call.1} parent=1 // pred_region
      _
    $region13: #{tpu_custom_call.1} parent=1 // pred_fallthru
      _
    // Predicated region
    $region14: #{tpu_custom_call.1} parent=1 // pred_check
      _
    $region15: #{tpu_custom_call.1} parent=1 // pred_check_branch
      %42 = sbr.rel (0) target = $region17
    $region16: #{tpu_custom_call.1} parent=1 // pred_region
      %44 = vsyncadd [#allocation7], 0
      %s45 = sshll.u32 %s3, 4
      %s46 = int_to_ptr.hbm [resolvable:$true] %s45
      %s47 = sshll.u32 [#allocation8], 4
      %s48 = int_to_ptr.vmem [resolvable:$true] %s47
      %53 = dma.hbm_to_vmem [thread:$0]  %s46, 128, %s48, [#allocation7], 64, 64, 4
    $region17: #{tpu_custom_call.1} parent=1 // pred_fallthru
      _
    // Predicated region
    $region18: #{tpu_custom_call.1} parent=1 // pred_check
      _
    $region19: #{tpu_custom_call.1} parent=1 // pred_check_branch
      %55 = sbr.rel (0) target = $region21
    $region20: #{tpu_custom_call.1} parent=1 // pred_region
      _
    $region21: #{tpu_custom_call.1} parent=1 // pred_fallthru
      _
    // Predicated region
    $region22: #{tpu_custom_call.1} parent=1 // pred_check
      _
    $region23: #{tpu_custom_call.1} parent=1 // pred_check_branch
      %57 = sbr.rel (0) target = $region25
    $region24: #{tpu_custom_call.1} parent=1 // pred_region
      _
    $region25: #{tpu_custom_call.1} parent=1 // pred_fallthru
      _
    // Predicated region
    $region26: #{tpu_custom_call.1} parent=1 // pred_check
      _
    $region27: #{tpu_custom_call.1} parent=1 // pred_check_branch
      %59 = sbr.rel (0) target = $region29
    $region28: #{tpu_custom_call.1} parent=1 // pred_region
      _
    $region29: #{tpu_custom_call.1} parent=1 // pred_fallthru
      _
    // Predicated region
    $region30: #{tpu_custom_call.1} parent=1 // pred_check
      _
    $region31: #{tpu_custom_call.1} parent=1 // pred_check_branch
      %61 = sbr.rel (0) target = $region33
    $region32: #{tpu_custom_call.1} parent=1 // pred_region
      _
    $region33: #{tpu_custom_call.1} parent=1 // pred_fallthru
      _
    // Predicated region
    $region34: #{tpu_custom_call.1} parent=1 // pred_check
      _
    $region35: #{tpu_custom_call.1} parent=1 // pred_check_branch
      %63 = sbr.rel (0) target = $region37
    $region36: #{tpu_custom_call.1} parent=1 // pred_region
      _
    $region37: #{tpu_custom_call.1} parent=1 // pred_fallthru
      _
    // Predicated region
    $region38: #{tpu_custom_call.1} parent=1 // pred_check
      _
    $region39: #{tpu_custom_call.1} parent=1 // pred_check_branch
      %65 = sbr.rel (0) target = $region41
    $region40: #{tpu_custom_call.1} parent=1 // pred_region
      %67 = dma.done [#allocation4], 128
    $region41: #{tpu_custom_call.1} parent=1 // pred_fallthru
      _
    // Predicated region
    $region42: #{tpu_custom_call.1} parent=1 // pred_check
      _
    $region43: #{tpu_custom_call.1} parent=1 // pred_check_branch
      %69 = sbr.rel (0) target = $region45
    $region44: #{tpu_custom_call.1} parent=1 // pred_region
      %71 = dma.done [#allocation7], 128
    $region45: #{tpu_custom_call.1} parent=1 // pred_fallthru
      _
    // Predicated region
    $region46: #{tpu_custom_call.1} parent=1 // pred_check
      _
    $region47: #{tpu_custom_call.1} parent=1 // pred_check_branch
      %73 = sbr.rel (0) target = $region49
    $region48: #{tpu_custom_call.1} parent=1 // pred_region
      %75 = dma.done [#allocation7], 128
    $region49: #{tpu_custom_call.1} parent=1 // pred_fallthru
      _
    %p77 = scmp.eq.s32.totalorder 0, 0
    // Predicated region
    $region50: #{tpu_custom_call.1} parent=1 // pred_check
      %p78 = pneg %p77
    $region51: #{tpu_custom_call.1} parent=1 // pred_check_branch
      %80 = sbr.rel (%p78) target = $region53
    $region52: #{tpu_custom_call.1} parent=1 // pred_region
      %v81 = vld [vmem:[#allocation6] sm:$0xff]
      %vm82 = vcmask 261120
      %83 = vst.msk [vmem:[#allocation2] sm:$0xff] %vm82, %v81
    $region53: #{tpu_custom_call.1} parent=1 // pred_fallthru
      _
    %v84 = vld [vmem:[%s2] sm:$0xf]
    %v85 = vld [vmem:[%s2 + $0x4] sm:$0xf]
    %v86 = vld [vmem:[%s2 + $0x8] sm:$0xf]
    %v87 = vld [vmem:[%s2 + $0xc] sm:$0xf]
    %v88 = vld [vmem:[#allocation8] sm:$0xf]
    %v89 = vld [vmem:[#allocation8 + $0x4] sm:$0xf]
    %v90 = vld [vmem:[%s5] sm:$0xf]
    %v91 = vld [vmem:[%s5 + $0x4] sm:$0xf]
    %v92 = vld [vmem:[%s5 + $0x8] sm:$0xf]
    %v93 = vld [vmem:[%s5 + $0xc] sm:$0xf]
    %v94 = vld [vmem:[%s5 + $0x10] sm:$0xf]
    %v95 = vld [vmem:[%s5 + $0x14] sm:$0xf]
    %v96 = vld [vmem:[%s5 + $0x18] sm:$0xf]
    %v97 = vld [vmem:[%s5 + $0x1c] sm:$0xf]
    %v98 = vld [vmem:[%s7] sm:$0xf]
    %v99 = vld [vmem:[%s7 + $0x4] sm:$0xf]
    %v100 = vld [vmem:[%s7 + $0x8] sm:$0xf]
    %v101 = vld [vmem:[%s7 + $0xc] sm:$0xf]
    %v102 = vld [vmem:[%s7 + $0x10] sm:$0xf]
    %v103 = vld [vmem:[%s7 + $0x14] sm:$0xf]
    %v104 = vld [vmem:[%s7 + $0x18] sm:$0xf]
    %v105 = vld [vmem:[%s7 + $0x1c] sm:$0xf]
    %v106 = vld [vmem:[%s4] sm:$0x1]
    %v108 = vperm.slane %v106, 0
    %v110 = vld [vmem:[%s6] sm:$0x1]
    %v112 = vperm.slane %v110, 0
    %v114 = vld [vmem:[%s8] sm:$0x1]
    %v116 = vperm.slane %v114, 0
    %v118 = vld [vmem:[#allocation2] sm:$0xff]
    %v119 = vld [vmem:[#allocation3] sm:$0xff]
    %v120 = vpack.c.bf16 %v118, %v118
    %v121 = vpack.c.bf16 %v119, %v119
    %v124 = vunpack.c.l.b16 %v88
    %v125 = vunpack.c.l.b16 %v89
    %v126 = vpack.c.b16 %v125, %v124
    %vm128 = vcmask 130048
    %v130 = vsel %vm128, %v121, 0
    %132 = vmatpush.bf16.msra.mxu0 0
    %133 = vmatpush.bf16.msra.mxu0 0
    %134 = vmatpush.bf16.msra.mxu0 0
    %135 = vmatpush.bf16.msra.mxu0 0
    %136 = vmatpush.bf16.msra.mxu0 0
    %137 = vmatpush.bf16.msra.mxu0 0
    %138 = vmatpush.bf16.msra.mxu0 0
    %139 = vmatpush.bf16.msra.mxu0 %v126
    %140 = vmatmul.bf16.gmra.mxu0 %v130
    %v141 = vpop.f32.mrf.mxu0
    %v142 = vadd.f32 0.0, %v141
    %v143 = vpop.f32.mrf.mxu0
    %144 = vdwg.mxu0
    %v149 = vunpack.c.l.b16 %v84
    %v150 = vunpack.c.l.b16 %v85
    %v151 = vunpack.c.l.b16 %v86
    %v152 = vunpack.c.l.b16 %v87
    %v153 = vpack.c.b16 %v150, %v149
    %v154 = vpack.c.b16 %v152, %v151
    %vm157 = vcmask 261120
    %v159 = vsel %vm157, %v120, 0
    %161 = vmatpush.bf16.msra.mxu0 0
    %162 = vmatpush.bf16.msra.mxu0 0
    %163 = vmatpush.bf16.msra.mxu0 0
    %164 = vmatpush.bf16.msra.mxu0 0
    %165 = vmatpush.bf16.msra.mxu0 0
    %166 = vmatpush.bf16.msra.mxu0 0
    %167 = vmatpush.bf16.msra.mxu0 %v154
    %168 = vmatpush.bf16.msra.mxu0 %v153
    %169 = vmatmul.bf16.gmra.mxu0 %v159
    %v170 = vpop.f32.mrf.mxu0
    %v171 = vadd.f32 %v142, %v170
    %v172 = vpop.f32.mrf.mxu0
    %173 = vdwg.mxu0
    %v174 = vadd.f32 %v171, %v108
    %v175 = vmax.f32 %v174, 0.0
    %v176 = vpack.c.bf16 %v175, %v175
    %v185 = vunpack.c.l.b16 %v90
    %v186 = vunpack.c.l.b16 %v91
    %v187 = vunpack.c.l.b16 %v92
    %v188 = vunpack.c.l.b16 %v93
    %v189 = vunpack.c.l.b16 %v94
    %v190 = vunpack.c.l.b16 %v95
    %v191 = vunpack.c.l.b16 %v96
    %v192 = vunpack.c.l.b16 %v97
    %v193 = vpack.c.b16 %v186, %v185
    %v194 = vpack.c.b16 %v188, %v187
    %v195 = vpack.c.b16 %v190, %v189
    %v196 = vpack.c.b16 %v192, %v191
    %vm201 = vcmask 523264
    %v203 = vsel %vm201, %v176, 0
    %205 = vmatpush.bf16.msra.mxu0 0
    %206 = vmatpush.bf16.msra.mxu0 0
    %207 = vmatpush.bf16.msra.mxu0 0
    %208 = vmatpush.bf16.msra.mxu0 0
    %209 = vmatpush.bf16.msra.mxu0 %v196
    %210 = vmatpush.bf16.msra.mxu0 %v195
    %211 = vmatpush.bf16.msra.mxu0 %v194
    %212 = vmatpush.bf16.msra.mxu0 %v193
    %213 = vmatmul.bf16.gmra.mxu0 %v203
    %v214 = vpop.f32.mrf.mxu0
    %v215 = vadd.f32 %v112, %v214
    %v216 = vpop.f32.mrf.mxu0
    %217 = vdwg.mxu0
    %v218 = vmax.f32 %v215, 0.0
    %v219 = vpack.c.bf16 %v218, %v218
    %v228 = vunpack.c.l.b16 %v98
    %v229 = vunpack.c.l.b16 %v99
    %v230 = vunpack.c.l.b16 %v100
    %v231 = vunpack.c.l.b16 %v101
    %v232 = vunpack.c.l.b16 %v102
    %v233 = vunpack.c.l.b16 %v103
    %v234 = vunpack.c.l.b16 %v104
    %v235 = vunpack.c.l.b16 %v105
    %v236 = vpack.c.b16 %v229, %v228
    %v237 = vpack.c.b16 %v231, %v230
    %v238 = vpack.c.b16 %v233, %v232
    %v239 = vpack.c.b16 %v235, %v234
    %v245 = vsel %vm201, %v219, 0
    %247 = vmatpush.bf16.msra.mxu0 0
    %248 = vmatpush.bf16.msra.mxu0 0
    %249 = vmatpush.bf16.msra.mxu0 0
    %250 = vmatpush.bf16.msra.mxu0 0
    %251 = vmatpush.bf16.msra.mxu0 %v239
    %252 = vmatpush.bf16.msra.mxu0 %v238
    %253 = vmatpush.bf16.msra.mxu0 %v237
    %254 = vmatpush.bf16.msra.mxu0 %v236
    %255 = vmatmul.bf16.gmra.mxu0 %v245
    %v256 = vpop.f32.mrf.mxu0
    %v257 = vadd.f32 %v116, %v256
    %v258 = vpop.f32.mrf.mxu0
    %259 = vdwg.mxu0
    %v260 = vadd.f32 %v118, %v257
    %261 = vst.msk [vmem:[#allocation9] sm:$0xff] %vm157, %v260
    %262 = vst.msk [vmem:[#allocation2] sm:$0xff] %vm157, %v260
    // Predicated region
    $region54: #{tpu_custom_call.1} parent=1 // pred_check
      _
    $region55: #{tpu_custom_call.1} parent=1 // pred_check_branch
      %264 = sbr.rel (0) target = $region57
    $region56: #{tpu_custom_call.1} parent=1 // pred_region
      %266 = vsyncadd [#allocation5], 0
      %s268 = sshll.u32 [#allocation9], 4
      %s269 = int_to_ptr.vmem [resolvable:$true] %s268
      %s270 = sshll.u32 %s9, 4
      %s271 = int_to_ptr.hbm [resolvable:$true] %s270
      %273 = dma.vmem_to_hbm [thread:$0]  %s269, 128, %s271, [#allocation5]
    $region57: #{tpu_custom_call.1} parent=1 // pred_fallthru
      _
    // Predicated region
    $region58: #{tpu_custom_call.1} parent=1 // pred_check
      _
    $region59: #{tpu_custom_call.1} parent=1 // pred_check_branch
      %275 = sbr.rel (0) target = $region61
    $region60: #{tpu_custom_call.1} parent=1 // pred_region
      %277 = dma.done [#allocation5], 128
    $region61: #{tpu_custom_call.1} parent=1 // pred_fallthru
      _
    %278 = vsyncpa [#allocation4], 1
    %279 = vsyncpa [#allocation7], 1
    %280 = vsyncpa [#allocation5], 1

</llo_original>
